<compile_context>
chip_gen: v7x
topology: tpu7x:2x2x1
jax: 0.10.0
libtpu: 0.0.40
codegen_flags: <defaults>
</compile_context>

<pallas_src>
import functools
import math

import jax
import jax.numpy as jnp
from jax.experimental import pallas as pl
from jax.experimental.pallas import tpu as pltpu


# ---------------------------------------------------------------------------
# helpers
# ---------------------------------------------------------------------------
def _largest_divisor(n, cap, multiple=1):
    """Largest divisor of n that is <= cap and a multiple of `multiple` (0 if none)."""
    cap = max(1, min(n, cap))
    for d in range(cap, 0, -1):
        if n % d == 0 and d % multiple == 0:
            return d
    return 0


# ---------------------------------------------------------------------------
# scaled dot-product attention kernel
# ---------------------------------------------------------------------------
def _sdpa_kernel(q_ref, k_ref, v_ref, o_ref, *, scale, lane_dense):
    # Blocks: (Gb, L2, Dk). Feed MXU native-dtype operands, accumulate in f32.
    q = q_ref[...]
    k = k_ref[...]
    v = v_ref[...]

    # scores = Q @ K^T / sqrt(Dk): batched contraction over the last dim,
    # transpose folded into the dot_general (no XLU transpose / VMEM copy).
    scores = jnp.einsum(
        "gqd,gkd->gqk", q, k, preferred_element_type=jnp.float32
    ) * scale                                            # (Gb, L2, L2) f32

    # numerically-stable softmax over the last axis (f32 math).
    m = jnp.max(scores, axis=-1, keepdims=True)
    e = jnp.exp(scores - m)
    denom = jnp.sum(e, axis=-1, keepdims=True)
    attn = e * pl.reciprocal(denom, approx=True)         # EUP reciprocal

    # context = attn @ V (attn cast back to the operand dtype for the MXU).
    ctx = jnp.einsum(
        "gqk,gkd->gqd", attn.astype(v.dtype), v, preferred_element_type=jnp.float32
    )                                                    # (Gb, L2, Dk) f32

    if lane_dense:
        gb, l2, dk = ctx.shape
        o_ref[...] = ctx.reshape(gb, l2 * dk).astype(o_ref.dtype)
    else:
        o_ref[...] = ctx.astype(o_ref.dtype)


def _sdpa_pallas(Q, K, V, *, lane_dense):
    B, H, L1, L2, Dk = Q.shape
    G = B * H * L1
    qf = Q.reshape(G, L2, Dk)
    kf = K.reshape(G, L2, Dk)
    vf = V.reshape(G, L2, Dk)

    itemsize = Q.dtype.itemsize
    per_group_in = L2 * Dk * itemsize          # one group of one operand
    per_group_f32 = L2 * L2 * 4                # scores/attn per group (f32)
    # TODO(synk): for very large len2 (>=2K) switch to a flash-style online
    # softmax with a KV grid axis instead of materializing (L2, L2) scores.

    # Batch many groups per grid step: ~1 MiB operand blocks, ~2 MiB of f32
    # scores, and keep G % Gb == 0 so no remainder masking is needed.
    cap = max(1, min((1 << 20) // per_group_in, (2 << 20) // per_group_f32))
    Gb = _largest_divisor(G, cap, 8) or _largest_divisor(G, cap, 1)
    if G > 1 and G // Gb < 2:
        # keep >= 2 grid steps so both v7x TensorCores get work
        half = max(1, G // 2)
        Gb = _largest_divisor(G, half, 8) or _largest_divisor(G, half, 1)
    # lane-dense 2-D output needs its 2nd-minor dim (Gb) to satisfy tiling
    lane_dense = lane_dense and (Gb % 8 == 0 or Gb == G)

    grid = (G // Gb,)
    in_spec = pl.BlockSpec((Gb, L2, Dk), lambda i: (i, 0, 0))
    if lane_dense:
        out_shape = jax.ShapeDtypeStruct((G, L2 * Dk), Q.dtype)
        out_spec = pl.BlockSpec((Gb, L2 * Dk), lambda i: (i, 0))
    else:
        out_shape = jax.ShapeDtypeStruct((G, L2, Dk), Q.dtype)
        out_spec = pl.BlockSpec((Gb, L2, Dk), lambda i: (i, 0, 0))

    # Raise the scoped-VMEM limit only when the enlarged blocks need it
    # (v5e default is 16 MiB); otherwise keep the platform default.
    est_vmem = 8 * Gb * per_group_in + 4 * Gb * per_group_f32
    vmem_limit = None if est_vmem <= 12 * (1 << 20) else min(2 * est_vmem, 64 * (1 << 20))

    cost = pl.CostEstimate(
        flops=4 * G * L2 * L2 * Dk,
        transcendentals=G * L2 * L2,
        bytes_accessed=4 * G * L2 * Dk * itemsize,
    )

    out = pl.pallas_call(
        functools.partial(
            _sdpa_kernel, scale=1.0 / math.sqrt(Dk), lane_dense=lane_dense
        ),
        out_shape=out_shape,
        grid_spec=pltpu.PrefetchScalarGridSpec(
            num_scalar_prefetch=0,
            grid=grid,
            in_specs=[in_spec, in_spec, in_spec],
            out_specs=out_spec,
        ),
        compiler_params=pltpu.CompilerParams(
            dimension_semantics=("parallel",),
            vmem_limit_bytes=vmem_limit,
        ),
        cost_estimate=cost,
    )(qf, kf, vf)

    return out.reshape(B, H, L1, L2, Dk)


def scaled_dot_product_attention(Q, K, V):
    """Q, K, V: (B, n_heads, len1, len2, d_k) -> context of the same shape."""
    try:
        return _sdpa_pallas(Q, K, V, lane_dense=True)
    except Exception:
        # Fallback: if this Mosaic build cannot lower the in-kernel
        # (Gb, L2, Dk) -> (Gb, L2*Dk) flatten, use the always-supported
        # 3-D output layout (same semantics, narrower stores).
        return _sdpa_pallas(Q, K, V, lane_dense=False)


# ---------------------------------------------------------------------------
# linear projection kernels (W_Q / W_K / W_V / fc_out)
# ---------------------------------------------------------------------------
def _linear_kernel(x_ref, w_ref, o_ref):
    o_ref[...] = jnp.dot(
        x_ref[...], w_ref[...], preferred_element_type=jnp.float32
    ).astype(o_ref.dtype)


def _linear_bias_kernel(x_ref, w_ref, b_ref, o_ref):
    acc = jnp.dot(x_ref[...], w_ref[...], preferred_element_type=jnp.float32)
    o_ref[...] = (acc + b_ref[...].astype(jnp.float32)).astype(o_ref.dtype)


def pallas_linear(x2d, w, b=None, row_block_cap=512):
    """y = x2d @ w (+ b); x2d: (M, K), w: (K, N), b: (N,) or None."""
    M, K = x2d.shape
    Kw, N = w.shape
    assert K == Kw
    tm = _largest_divisor(M, row_block_cap, 8) or M
    grid = (M // tm,)

    in_specs = [
        pl.BlockSpec((tm, K), lambda i: (i, 0)),
        pl.BlockSpec((K, N), lambda i: (0, 0)),
    ]
    operands = [x2d, w]
    kernel = _linear_kernel
    if b is not None:
        in_specs.append(pl.BlockSpec((1, N), lambda i: (0, 0)))
        operands.append(b.reshape(1, N))
        kernel = _linear_bias_kernel

    return pl.pallas_call(
        kernel,
        out_shape=jax.ShapeDtypeStruct((M, N), x2d.dtype),
        grid_spec=pltpu.PrefetchScalarGridSpec(
            num_scalar_prefetch=0,
            grid=grid,
            in_specs=in_specs,
            out_specs=pl.BlockSpec((tm, N), lambda i: (i, 0)),
        ),
        compiler_params=pltpu.CompilerParams(
            dimension_semantics=("parallel",)
        ),
    )(*operands)


# ---------------------------------------------------------------------------
# SMultiHeadAttention forward
# ---------------------------------------------------------------------------
def smultihead_attention(input_Q, input_K, input_V, params, heads):
    B, N, T, C = input_Q.shape
    head_dim = C // heads

    def project(x, w):
        y = pallas_linear(x.reshape(B * N * T, C), w)
        y = y.reshape(B, N, T, heads, head_dim)
        # torch .transpose(1, 3): (B, N, T, H, Dh) -> (B, H, T, N, Dh)
        return jnp.transpose(y, (0, 3, 2, 1, 4))

    Q = project(input_Q, params["W_Q"])
    K = project(input_K, params["W_K"])
    V = project(input_V, params["W_V"])

    context = scaled_dot_product_attention(Q, K, V)        # (B, H, T, N, Dh)
    # torch .permute(0, 3, 2, 1, 4): (B, H, T, N, Dh) -> (B, N, T, H, Dh)
    context = jnp.transpose(context, (0, 3, 2, 1, 4))
    context = context.reshape(B * N * T, heads * head_dim)

    out = pallas_linear(context, params["fc_out_w"], params["fc_out_b"])
    return out.reshape(B, N, T, C)


# ---------------------------------------------------------------------------
# pure-JAX reference
# ---------------------------------------------------------------------------
def _reference(input_Q, input_K, input_V, params, heads):
    B, N, T, C = input_Q.shape
    Dh = C // heads

    def project(x, w):
        y = (x.reshape(B * N * T, C) @ w).reshape(B, N, T, heads, Dh)
        return jnp.transpose(y, (0, 3, 2, 1, 4))

    Q = project(input_Q, params["W_Q"])
    K = project(input_K, params["W_K"])
    V = project(input_V, params["W_V"])
    scores = jnp.einsum("bhtnd,bhtmd->bhtnm", Q, K) / math.sqrt(Dh)
    attn = jax.nn.softmax(scores, axis=-1)
    ctx = jnp.einsum("bhtnm,bhtmd->bhtnd", attn, V)
    ctx = jnp.transpose(ctx, (0, 3, 2, 1, 4)).reshape(B * N * T, heads * Dh)
    out = ctx @ params["fc_out_w"] + params["fc_out_b"]
    return out.reshape(B, N, T, C)


if __name__ == "__main__":
    # Small shapes consistent with the module: inputs (B, N, T, C=embed_size).
    B, N, T, C, heads = 2, 16, 8, 32, 4
    head_dim = C // heads

    key = jax.random.PRNGKey(0)
    kq, kk, kv, kwq, kwk, kwv, kwo, kbo = jax.random.split(key, 8)
    input_Q = jax.random.normal(kq, (B, N, T, C), dtype=jnp.float32)
    input_K = jax.random.normal(kk, (B, N, T, C), dtype=jnp.float32)
    input_V = jax.random.normal(kv, (B, N, T, C), dtype=jnp.float32)

    wscale = 1.0 / math.sqrt(C)
    params = {
        "W_Q": jax.random.normal(kwq, (C, heads * head_dim), jnp.float32) * wscale,
        "W_K": jax.random.normal(kwk, (C, heads * head_dim), jnp.float32) * wscale,
        "W_V": jax.random.normal(kwv, (C, heads * head_dim), jnp.float32) * wscale,
        "fc_out_w": jax.random.normal(kwo, (heads * head_dim, C), jnp.float32) * wscale,
        "fc_out_b": jax.random.normal(kbo, (C,), jnp.float32) * 0.01,
    }

    out = smultihead_attention(input_Q, input_K, input_V, params, heads)
    jax.block_until_ready(out)

    ref = _reference(input_Q, input_K, input_V, params, heads)
    assert out.shape == (B, N, T, C)
    # approx=True EUP reciprocal in the softmax => slightly looser tolerance
    assert jnp.allclose(out, ref, atol=1e-2, rtol=1e-2), "mismatch vs reference"

    print("KERNEL_OK")
</pallas_src>

<mosaic_0001>
module attributes {stable_mosaic.version = 11 : i64} {
  func.func @_linear_kernel(%arg0: i32, %arg1: memref<256x32xf32, #tpu.memory_space<vmem>>, %arg2: memref<32x32xf32, #tpu.memory_space<vmem>>, %arg3: memref<256x32xf32, #tpu.memory_space<vmem>>) attributes {dimension_semantics = [#tpu.dimension_semantics<parallel>], iteration_bounds = array<i64: 1>, scalar_prefetch = 0 : i64, scratch_operands = 0 : i64, tpu.core_type = #tpu.core_type<tc>, window_params = [{transform_indices = @transform_0, window_bounds = array<i64: 256, 32>}, {pipeline_mode = #tpu.pipeline_mode<synchronous>, transform_indices = @transform_1, window_bounds = array<i64: 32, 32>}, {transform_indices = @transform_2, window_bounds = array<i64: 256, 32>}]} {
    %c0 = arith.constant 0 : index
    %c0_0 = arith.constant 0 : index
    %0 = vector.load %arg1[%c0, %c0_0] : memref<256x32xf32, #tpu.memory_space<vmem>>, vector<256x32xf32>
    %c0_1 = arith.constant 0 : index
    %c0_2 = arith.constant 0 : index
    %1 = vector.load %arg2[%c0_1, %c0_2] : memref<32x32xf32, #tpu.memory_space<vmem>>, vector<32x32xf32>
    %cst = arith.constant dense<0.000000e+00> : vector<256x32xf32>
    %2 = tpu.matmul %0, %1, %cst {dimension_numbers = #tpu.dot_dimension_numbers<[1], [0], [0], [1], [0, 0, 1, 1], [], []>} : vector<256x32xf32>, vector<32x32xf32>, vector<256x32xf32> -> vector<256x32xf32>
    %c0_3 = arith.constant 0 : index
    %c0_4 = arith.constant 0 : index
    %3 = vector.load %arg3[%c0_3, %c0_4] : memref<256x32xf32, #tpu.memory_space<vmem>>, vector<256x32xf32>
    tpu.vector_store %arg3[%c0_3, %c0_4], %2 {strides = array<i32>} : memref<256x32xf32, #tpu.memory_space<vmem>>, vector<256x32xf32>,
    return
  }
  func.func @transform_0(%arg0: i32) -> (i32, i32) {
    %c0_i32 = arith.constant 0 : i32
    %c0_i32_0 = arith.constant 0 : i32
    return %arg0, %c0_i32 : i32, i32
  }
  func.func @transform_1(%arg0: i32) -> (i32, i32) {
    %c0_i32 = arith.constant 0 : i32
    %c0_i32_0 = arith.constant 0 : i32
    %c0_i32_1 = arith.constant 0 : i32
    return %c0_i32, %c0_i32_0 : i32, i32
  }
  func.func @transform_2(%arg0: i32) -> (i32, i32) {
    %c0_i32 = arith.constant 0 : i32
    %c0_i32_0 = arith.constant 0 : i32
    return %arg0, %c0_i32 : i32, i32
  }
}

</mosaic_0001>

<llo_original>
// kernel: tpu_custom_call.1
$region0: #{tpu_custom_call.1}
  #allocation0 [shape = 'u32[]', space=smem, size = 0x4, offset = 0x4, fixed_abs, tag = 'smem constant byte address 0x4 - core index']
  #allocation1 [shape = 'u32[144,128]{1,0:T(1,128)}', space=vmem, size = 0x12000, scoped, tag = 'internal scratch']
  %s0 = inlined_call_operand.vmem [shape: f32[256,32], index: 0, kind: input, shape index: {}]
  %s1 = inlined_call_operand.vmem [shape: f32[32,32], index: 1, kind: input, shape index: {}]
  %s2 = inlined_call_operand.vmem [shape: f32[256,32], index: 2, kind: output, shape index: {}]
  %s3 = sld [smem:[#allocation0]]
  $region18: #{tpu_custom_call.1} parent=0
    _
  %s5 = ssub.s32 1, %s3
  %s6 = scalar_select 0, %s5, %s3
  // Predicated region
  $region2: #{tpu_custom_call.1} parent=0 // pred_check
    _
  $region3: #{tpu_custom_call.1} parent=0 // pred_check_branch
    %8 = sbr.rel (0) target = $region5
  $region4: #{tpu_custom_call.1} parent=0 // pred_region
    _
  $region5: #{tpu_custom_call.1} parent=0 // pred_fallthru
    _
  // Predicated region
  $region6: #{tpu_custom_call.1} parent=0 // pred_check
    _
  $region7: #{tpu_custom_call.1} parent=0 // pred_check_branch
    %10 = sbr.rel (0) target = $region9
  $region8: #{tpu_custom_call.1} parent=0 // pred_region
    _
  $region9: #{tpu_custom_call.1} parent=0 // pred_fallthru
    _
  %v11 = vld [vmem:[%s0] sm:$0xff]
  %v12 = vld [vmem:[%s0 + $0x8] sm:$0xff]
  %v13 = vld [vmem:[%s0 + $0x10] sm:$0xff]
  %v14 = vld [vmem:[%s0 + $0x18] sm:$0xff]
  %v15 = vld [vmem:[%s0 + $0x20] sm:$0xff]
  %v16 = vld [vmem:[%s0 + $0x28] sm:$0xff]
  %v17 = vld [vmem:[%s0 + $0x30] sm:$0xff]
  %v18 = vld [vmem:[%s0 + $0x38] sm:$0xff]
  %v19 = vld [vmem:[%s0 + $0x40] sm:$0xff]
  %v20 = vld [vmem:[%s0 + $0x48] sm:$0xff]
  %v21 = vld [vmem:[%s0 + $0x50] sm:$0xff]
  %v22 = vld [vmem:[%s0 + $0x58] sm:$0xff]
  %v23 = vld [vmem:[%s0 + $0x60] sm:$0xff]
  %v24 = vld [vmem:[%s0 + $0x68] sm:$0xff]
  %v25 = vld [vmem:[%s0 + $0x70] sm:$0xff]
  %v26 = vld [vmem:[%s0 + $0x78] sm:$0xff]
  %v27 = vld [vmem:[%s0 + $0x80] sm:$0xff]
  %v28 = vld [vmem:[%s0 + $0x88] sm:$0xff]
  %v29 = vld [vmem:[%s0 + $0x90] sm:$0xff]
  %v30 = vld [vmem:[%s0 + $0x98] sm:$0xff]
  %v31 = vld [vmem:[%s0 + $0xa0] sm:$0xff]
  %v32 = vld [vmem:[%s0 + $0xa8] sm:$0xff]
  %v33 = vld [vmem:[%s0 + $0xb0] sm:$0xff]
  %v34 = vld [vmem:[%s0 + $0xb8] sm:$0xff]
  %v35 = vld [vmem:[%s0 + $0xc0] sm:$0xff]
  %v36 = vld [vmem:[%s0 + $0xc8] sm:$0xff]
  %v37 = vld [vmem:[%s0 + $0xd0] sm:$0xff]
  %v38 = vld [vmem:[%s0 + $0xd8] sm:$0xff]
  %v39 = vld [vmem:[%s0 + $0xe0] sm:$0xff]
  %v40 = vld [vmem:[%s0 + $0xe8] sm:$0xff]
  %v41 = vld [vmem:[%s0 + $0xf0] sm:$0xff]
  %v42 = vld [vmem:[%s0 + $0xf8] sm:$0xff]
  %v43 = vld [vmem:[%s1] sm:$0xff]
  %v44 = vld [vmem:[%s1 + $0x8] sm:$0xff]
  %v45 = vld [vmem:[%s1 + $0x10] sm:$0xff]
  %v46 = vld [vmem:[%s1 + $0x18] sm:$0xff]
  %vm47 = vcmask 261120
  %v49 = vsel %vm47, %v11, 0
  %v52 = vsel %vm47, %v12, 0
  %v55 = vsel %vm47, %v13, 0
  %v58 = vsel %vm47, %v14, 0
  %v61 = vsel %vm47, %v15, 0
  %v64 = vsel %vm47, %v16, 0
  %v67 = vsel %vm47, %v17, 0
  %v70 = vsel %vm47, %v18, 0
  %v73 = vsel %vm47, %v19, 0
  %v76 = vsel %vm47, %v20, 0
  %v79 = vsel %vm47, %v21, 0
  %v82 = vsel %vm47, %v22, 0
  %v85 = vsel %vm47, %v23, 0
  %v88 = vsel %vm47, %v24, 0
  %v91 = vsel %vm47, %v25, 0
  %v94 = vsel %vm47, %v26, 0
  %v97 = vsel %vm47, %v27, 0
  %v100 = vsel %vm47, %v28, 0
  %v103 = vsel %vm47, %v29, 0
  %v106 = vsel %vm47, %v30, 0
  %v109 = vsel %vm47, %v31, 0
  %v112 = vsel %vm47, %v32, 0
  %v115 = vsel %vm47, %v33, 0
  %v118 = vsel %vm47, %v34, 0
  %v121 = vsel %vm47, %v35, 0
  %v124 = vsel %vm47, %v36, 0
  %v127 = vsel %vm47, %v37, 0
  %v130 = vsel %vm47, %v38, 0
  %v133 = vsel %vm47, %v39, 0
  %v136 = vsel %vm47, %v40, 0
  %v139 = vsel %vm47, %v41, 0
  %v142 = vsel %vm47, %v42, 0
  %144 = vmatprep.subr.mxu0 0.0
  %145 = vmatpush1.msra.mxu0 %v43
  %146 = vmatprep.subr.mxu0 0.0
  %147 = vmatpush1.msra.mxu0 %v44
  %148 = vmatprep.subr.mxu0 0.0
  %149 = vmatpush1.msra.mxu0 %v45
  %150 = vmatprep.subr.mxu0 0.0
  %151 = vmatpush1.msra.mxu0 %v46
  %152 = vmatprep.subr.mxu0 0.0
  %153 = vmatpush1.msra.mxu0 0.0
  %154 = vmatprep.subr.mxu0 0.0
  %155 = vmatpush1.msra.mxu0 0.0
  %156 = vmatprep.subr.mxu0 0.0
  %157 = vmatpush1.msra.mxu0 0.0
  %158 = vmatprep.subr.mxu0 0.0
  %159 = vmatpush1.msra.mxu0 0.0
  %160 = vmatprep.subr.mxu0 0.0
  %161 = vmatpush1.msra.mxu0 0.0
  %162 = vmatprep.subr.mxu0 0.0
  %163 = vmatpush1.msra.mxu0 0.0
  %164 = vmatprep.subr.mxu0 0.0
  %165 = vmatpush1.msra.mxu0 0.0
  %166 = vmatprep.subr.mxu0 0.0
  %167 = vmatpush1.msra.mxu0 0.0
  %168 = vmatprep.subr.mxu0 0.0
  %169 = vmatpush1.msra.mxu0 0.0
  %170 = vmatprep.subr.mxu0 0.0
  %171 = vmatpush1.msra.mxu0 0.0
  %172 = vmatprep.subr.mxu0 0.0
  %173 = vmatpush1.msra.mxu0 0.0
  %174 = vmatprep.subr.mxu0 0.0
  %175 = vmatpush1.msra.mxu0 0.0
  %176 = vmatprep.subr.mxu0 0.0
  %177 = vmatpush1.msra.mxu0 0.0
  %178 = vmatprep.subr.mxu0 0.0
  %179 = vmatpush1.msra.mxu0 0.0
  %180 = vmatprep.subr.mxu0 0.0
  %181 = vmatpush1.msra.mxu0 0.0
  %182 = vmatprep.subr.mxu0 0.0
  %183 = vmatpush1.msra.mxu0 0.0
  %184 = vmatprep.subr.mxu0 0.0
  %185 = vmatpush1.msra.mxu0 0.0
  %186 = vmatprep.subr.mxu0 0.0
  %187 = vmatpush1.msra.mxu0 0.0
  %188 = vmatprep.subr.mxu0 0.0
  %189 = vmatpush1.msra.mxu0 0.0
  %190 = vmatprep.subr.mxu0 0.0
  %191 = vmatpush1.msra.mxu0 0.0
  %192 = vmatprep.subr.mxu0 0.0
  %193 = vmatpush1.msra.mxu0 0.0
  %194 = vmatprep.subr.mxu0 0.0
  %195 = vmatpush1.msra.mxu0 0.0
  %196 = vmatprep.subr.mxu0 0.0
  %197 = vmatpush1.msra.mxu0 0.0
  %198 = vmatprep.subr.mxu0 0.0
  %199 = vmatpush1.msra.mxu0 0.0
  %200 = vmatprep.subr.mxu0 0.0
  %201 = vmatpush1.msra.mxu0 0.0
  %202 = vmatprep.subr.mxu0 0.0
  %203 = vmatpush1.msra.mxu0 0.0
  %204 = vmatprep.subr.mxu0 0.0
  %205 = vmatpush1.msra.mxu0 0.0
  %206 = vmatprep.subr.mxu0 0.0
  %207 = vmatpush1.msra.mxu0 0.0
  %208 = vmatprep.mubr.f32.mxu0 0.0
  %209 = vmatmul.mubr.f32.gmra.mrb[0].mxu0 %v49
  %v210 = vpop.f32.mrb[0].mxu0
  %v211 = vadd.f32 0.0, %v210
  %v212 = vpop.f32.mrb[0].mxu0
  %213 = vmatprep.mubr.f32.mxu0 0.0
  %214 = vmatmul.mubr.f32.gmra.mrb[0].mxu0 %v52
  %v215 = vpop.f32.mrb[0].mxu0
  %v216 = vadd.f32 0.0, %v215
  %v217 = vpop.f32.mrb[0].mxu0
  %218 = vmatprep.mubr.f32.mxu0 0.0
  %219 = vmatmul.mubr.f32.gmra.mrb[0].mxu0 %v55
  %v220 = vpop.f32.mrb[0].mxu0
  %v221 = vadd.f32 0.0, %v220
  %v222 = vpop.f32.mrb[0].mxu0
  %223 = vmatprep.mubr.f32.mxu0 0.0
  %224 = vmatmul.mubr.f32.gmra.mrb[0].mxu0 %v58
  %v225 = vpop.f32.mrb[0].mxu0
  %v226 = vadd.f32 0.0, %v225
  %v227 = vpop.f32.mrb[0].mxu0
  %228 = vmatprep.mubr.f32.mxu0 0.0
  %229 = vmatmul.mubr.f32.gmra.mrb[0].mxu0 %v61
  %v230 = vpop.f32.mrb[0].mxu0
  %v231 = vadd.f32 0.0, %v230
  %v232 = vpop.f32.mrb[0].mxu0
  %233 = vmatprep.mubr.f32.mxu0 0.0
  %234 = vmatmul.mubr.f32.gmra.mrb[0].mxu0 %v64
  %v235 = vpop.f32.mrb[0].mxu0
  %v236 = vadd.f32 0.0, %v235
  %v237 = vpop.f32.mrb[0].mxu0
  %238 = vmatprep.mubr.f32.mxu0 0.0
  %239 = vmatmul.mubr.f32.gmra.mrb[0].mxu0 %v67
  %v240 = vpop.f32.mrb[0].mxu0
  %v241 = vadd.f32 0.0, %v240
  %v242 = vpop.f32.mrb[0].mxu0
  %243 = vmatprep.mubr.f32.mxu0 0.0
  %244 = vmatmul.mubr.f32.gmra.mrb[0].mxu0 %v70
  %v245 = vpop.f32.mrb[0].mxu0
  %v246 = vadd.f32 0.0, %v245
  %v247 = vpop.f32.mrb[0].mxu0
  %248 = vmatprep.mubr.f32.mxu0 0.0
  %249 = vmatmul.mubr.f32.gmra.mrb[0].mxu0 %v73
  %v250 = vpop.f32.mrb[0].mxu0
  %v251 = vadd.f32 0.0, %v250
  %v252 = vpop.f32.mrb[0].mxu0
  %253 = vmatprep.mubr.f32.mxu0 0.0
  %254 = vmatmul.mubr.f32.gmra.mrb[0].mxu0 %v76
  %v255 = vpop.f32.mrb[0].mxu0
  %v256 = vadd.f32 0.0, %v255
  %v257 = vpop.f32.mrb[0].mxu0
  %258 = vmatprep.mubr.f32.mxu0 0.0
  %259 = vmatmul.mubr.f32.gmra.mrb[0].mxu0 %v79
  %v260 = vpop.f32.mrb[0].mxu0
  %v261 = vadd.f32 0.0, %v260
  %v262 = vpop.f32.mrb[0].mxu0
  %263 = vmatprep.mubr.f32.mxu0 0.0
  %264 = vmatmul.mubr.f32.gmra.mrb[0].mxu0 %v82
  %v265 = vpop.f32.mrb[0].mxu0
  %v266 = vadd.f32 0.0, %v265
  %v267 = vpop.f32.mrb[0].mxu0
  %268 = vmatprep.mubr.f32.mxu0 0.0
  %269 = vmatmul.mubr.f32.gmra.mrb[0].mxu0 %v85
  %v270 = vpop.f32.mrb[0].mxu0
  %v271 = vadd.f32 0.0, %v270
  %v272 = vpop.f32.mrb[0].mxu0
  %273 = vmatprep.mubr.f32.mxu0 0.0
  %274 = vmatmul.mubr.f32.gmra.mrb[0].mxu0 %v88
  %v275 = vpop.f32.mrb[0].mxu0
  %v276 = vadd.f32 0.0, %v275
  %v277 = vpop.f32.mrb[0].mxu0
  %278 = vmatprep.mubr.f32.mxu0 0.0
  %279 = vmatmul.mubr.f32.gmra.mrb[0].mxu0 %v91
  %v280 = vpop.f32.mrb[0].mxu0
  %v281 = vadd.f32 0.0, %v280
  %v282 = vpop.f32.mrb[0].mxu0
  %283 = vmatprep.mubr.f32.mxu0 0.0
  %284 = vmatmul.mubr.f32.gmra.mrb[0].mxu0 %v94
  %v285 = vpop.f32.mrb[0].mxu0
  %v286 = vadd.f32 0.0, %v285
  %v287 = vpop.f32.mrb[0].mxu0
  %288 = vmatprep.mubr.f32.mxu0 0.0
  %289 = vmatmul.mubr.f32.gmra.mrb[0].mxu0 %v97
  %v290 = vpop.f32.mrb[0].mxu0
  %v291 = vadd.f32 0.0, %v290
  %v292 = vpop.f32.mrb[0].mxu0
  %293 = vmatprep.mubr.f32.mxu0 0.0
  %294 = vmatmul.mubr.f32.gmra.mrb[0].mxu0 %v100
  %v295 = vpop.f32.mrb[0].mxu0
  %v296 = vadd.f32 0.0, %v295
  %v297 = vpop.f32.mrb[0].mxu0
  %298 = vmatprep.mubr.f32.mxu0 0.0
  %299 = vmatmul.mubr.f32.gmra.mrb[0].mxu0 %v103
  %v300 = vpop.f32.mrb[0].mxu0
  %v301 = vadd.f32 0.0, %v300
  %v302 = vpop.f32.mrb[0].mxu0
  %303 = vmatprep.mubr.f32.mxu0 0.0
  %304 = vmatmul.mubr.f32.gmra.mrb[0].mxu0 %v106
  %v305 = vpop.f32.mrb[0].mxu0
  %v306 = vadd.f32 0.0, %v305
  %v307 = vpop.f32.mrb[0].mxu0
  %308 = vmatprep.mubr.f32.mxu0 0.0
  %309 = vmatmul.mubr.f32.gmra.mrb[0].mxu0 %v109
  %v310 = vpop.f32.mrb[0].mxu0
  %v311 = vadd.f32 0.0, %v310
  %v312 = vpop.f32.mrb[0].mxu0
  %313 = vmatprep.mubr.f32.mxu0 0.0
  %314 = vmatmul.mubr.f32.gmra.mrb[0].mxu0 %v112
  %v315 = vpop.f32.mrb[0].mxu0
  %v316 = vadd.f32 0.0, %v315
  %v317 = vpop.f32.mrb[0].mxu0
  %318 = vmatprep.mubr.f32.mxu0 0.0
  %319 = vmatmul.mubr.f32.gmra.mrb[0].mxu0 %v115
  %v320 = vpop.f32.mrb[0].mxu0
  %v321 = vadd.f32 0.0, %v320
  %v322 = vpop.f32.mrb[0].mxu0
  %323 = vmatprep.mubr.f32.mxu0 0.0
  %324 = vmatmul.mubr.f32.gmra.mrb[0].mxu0 %v118
  %v325 = vpop.f32.mrb[0].mxu0
  %v326 = vadd.f32 0.0, %v325
  %v327 = vpop.f32.mrb[0].mxu0
  %328 = vmatprep.mubr.f32.mxu0 0.0
  %329 = vmatmul.mubr.f32.gmra.mrb[0].mxu0 %v121
  %v330 = vpop.f32.mrb[0].mxu0
  %v331 = vadd.f32 0.0, %v330
  %v332 = vpop.f32.mrb[0].mxu0
  %333 = vmatprep.mubr.f32.mxu0 0.0
  %334 = vmatmul.mubr.f32.gmra.mrb[0].mxu0 %v124
  %v335 = vpop.f32.mrb[0].mxu0
  %v336 = vadd.f32 0.0, %v335
  %v337 = vpop.f32.mrb[0].mxu0
  %338 = vmatprep.mubr.f32.mxu0 0.0
  %339 = vmatmul.mubr.f32.gmra.mrb[0].mxu0 %v127
  %v340 = vpop.f32.mrb[0].mxu0
  %v341 = vadd.f32 0.0, %v340
  %v342 = vpop.f32.mrb[0].mxu0
  %343 = vmatprep.mubr.f32.mxu0 0.0
  %344 = vmatmul.mubr.f32.gmra.mrb[0].mxu0 %v130
  %v345 = vpop.f32.mrb[0].mxu0
  %v346 = vadd.f32 0.0, %v345
  %v347 = vpop.f32.mrb[0].mxu0
  %348 = vmatprep.mubr.f32.mxu0 0.0
  %349 = vmatmul.mubr.f32.gmra.mrb[0].mxu0 %v133
  %v350 = vpop.f32.mrb[0].mxu0
  %v351 = vadd.f32 0.0, %v350
  %v352 = vpop.f32.mrb[0].mxu0
  %353 = vmatprep.mubr.f32.mxu0 0.0
  %354 = vmatmul.mubr.f32.gmra.mrb[0].mxu0 %v136
  %v355 = vpop.f32.mrb[0].mxu0
  %v356 = vadd.f32 0.0, %v355
  %v357 = vpop.f32.mrb[0].mxu0
  %358 = vmatprep.mubr.f32.mxu0 0.0
  %359 = vmatmul.mubr.f32.gmra.mrb[0].mxu0 %v139
  %v360 = vpop.f32.mrb[0].mxu0
  %v361 = vadd.f32 0.0, %v360
  %v362 = vpop.f32.mrb[0].mxu0
  %363 = vmatprep.mubr.f32.mxu0 0.0
  %364 = vmatmul.mubr.f32.gmra.mrb[0].mxu0 %v142
  %v365 = vpop.f32.mrb[0].mxu0
  %v366 = vadd.f32 0.0, %v365
  %v367 = vpop.f32.mrb[0].mxu0
  %368 = vdwg.mxu0
  %369 = vst.msk [vmem:[%s2] sm:$0xff] %vm47, %v211
  %370 = vst.msk [vmem:[%s2 + $0x8] sm:$0xff] %vm47, %v216
  %371 = vst.msk [vmem:[%s2 + $0x10] sm:$0xff] %vm47, %v221
  %372 = vst.msk [vmem:[%s2 + $0x18] sm:$0xff] %vm47, %v226
  %373 = vst.msk [vmem:[%s2 + $0x20] sm:$0xff] %vm47, %v231
  %374 = vst.msk [vmem:[%s2 + $0x28] sm:$0xff] %vm47, %v236
  %375 = vst.msk [vmem:[%s2 + $0x30] sm:$0xff] %vm47, %v241
  %376 = vst.msk [vmem:[%s2 + $0x38] sm:$0xff] %vm47, %v246
  %377 = vst.msk [vmem:[%s2 + $0x40] sm:$0xff] %vm47, %v251
  %378 = vst.msk [vmem:[%s2 + $0x48] sm:$0xff] %vm47, %v256
  %379 = vst.msk [vmem:[%s2 + $0x50] sm:$0xff] %vm47, %v261
  %380 = vst.msk [vmem:[%s2 + $0x58] sm:$0xff] %vm47, %v266
  %381 = vst.msk [vmem:[%s2 + $0x60] sm:$0xff] %vm47, %v271
  %382 = vst.msk [vmem:[%s2 + $0x68] sm:$0xff] %vm47, %v276
  %383 = vst.msk [vmem:[%s2 + $0x70] sm:$0xff] %vm47, %v281
  %384 = vst.msk [vmem:[%s2 + $0x78] sm:$0xff] %vm47, %v286
  %385 = vst.msk [vmem:[%s2 + $0x80] sm:$0xff] %vm47, %v291
  %386 = vst.msk [vmem:[%s2 + $0x88] sm:$0xff] %vm47, %v296
  %387 = vst.msk [vmem:[%s2 + $0x90] sm:$0xff] %vm47, %v301
  %388 = vst.msk [vmem:[%s2 + $0x98] sm:$0xff] %vm47, %v306
  %389 = vst.msk [vmem:[%s2 + $0xa0] sm:$0xff] %vm47, %v311
  %390 = vst.msk [vmem:[%s2 + $0xa8] sm:$0xff] %vm47, %v316
  %391 = vst.msk [vmem:[%s2 + $0xb0] sm:$0xff] %vm47, %v321
  %392 = vst.msk [vmem:[%s2 + $0xb8] sm:$0xff] %vm47, %v326
  %393 = vst.msk [vmem:[%s2 + $0xc0] sm:$0xff] %vm47, %v331
  %394 = vst.msk [vmem:[%s2 + $0xc8] sm:$0xff] %vm47, %v336
  %395 = vst.msk [vmem:[%s2 + $0xd0] sm:$0xff] %vm47, %v341
  %396 = vst.msk [vmem:[%s2 + $0xd8] sm:$0xff] %vm47, %v346
  %397 = vst.msk [vmem:[%s2 + $0xe0] sm:$0xff] %vm47, %v351
  %398 = vst.msk [vmem:[%s2 + $0xe8] sm:$0xff] %vm47, %v356
  %399 = vst.msk [vmem:[%s2 + $0xf0] sm:$0xff] %vm47, %v361
  %400 = vst.msk [vmem:[%s2 + $0xf8] sm:$0xff] %vm47, %v366
  // Predicated region
  $region10: #{tpu_custom_call.1} parent=0 // pred_check
    _
  $region11: #{tpu_custom_call.1} parent=0 // pred_check_branch
    %402 = sbr.rel (0) target = $region13
  $region12: #{tpu_custom_call.1} parent=0 // pred_region
    _
  $region13: #{tpu_custom_call.1} parent=0 // pred_fallthru
    _
  // Predicated region
  $region14: #{tpu_custom_call.1} parent=0 // pred_check
    _
  $region15: #{tpu_custom_call.1} parent=0 // pred_check_branch
    %404 = sbr.rel (0) target = $region17
  $region16: #{tpu_custom_call.1} parent=0 // pred_region
    _
  $region17: #{tpu_custom_call.1} parent=0 // pred_fallthru
    _

</llo_original>
